<compile_context>
chip_gen: v6e
topology: v6e:2x2x1
jax: 0.10.0
libtpu: 0.0.40
codegen_flags: <defaults>
</compile_context>

<pallas_src>
import math

import jax
import jax.numpy as jnp
from jax.experimental import pallas as pl
from jax.experimental.pallas import tpu as pltpu

NUM_DIM = 3
A = 5.1
EPSILON = 6.0 / 8.0 * A
ETA = 1.0
EPS1 = 1e-12
EIGHT_PI_ETA = 8.0 * math.pi * ETA
LANES = 128


def m_ij_kernel(x_ref, z_ref):
    """x_ref: (6, TR, 128) component-major coords; z_ref: (9, TR, 128) flattened M_ij."""
    v0 = x_ref[0] - x_ref[3]                                  # (TR, 128)
    v1 = x_ref[1] - x_ref[4]
    v2 = x_ref[2] - x_ref[5]

    r_sq = v0 * v0 + v1 * v1 + v2 * v2
    r = jnp.sqrt(r_sq)

    # Exact divisions (bandwidth-bound kernel: exact math is free in wall-clock).
    prefactor = 1.0 / (EIGHT_PI_ETA * (r + EPSILON))
    s = prefactor / (r_sq + EPS1)

    o01 = v0 * v1 * s
    o02 = v0 * v2 * s
    o12 = v1 * v2 * s

    # Row-major flattened 3x3 block; identity contribution = "+ prefactor" on the
    # diagonal planes (0, 4, 8). Direct per-plane stores, no concatenate temp.
    z_ref[0] = v0 * v0 * s + prefactor
    z_ref[1] = o01
    z_ref[2] = o02
    z_ref[3] = o01
    z_ref[4] = v1 * v1 * s + prefactor
    z_ref[5] = o12
    z_ref[6] = o02
    z_ref[7] = o12
    z_ref[8] = v2 * v2 * s + prefactor


def m_ij_batched(x_batch, *, tile_rows=256):
    """x_batch: (6, N) float32 -> (9, N) float32 (row-major flattened M_ij per pair)."""
    x_batch = jnp.asarray(x_batch, jnp.float32)
    assert x_batch.shape[0] == 2 * NUM_DIM
    n = x_batch.shape[1]

    rows = pl.cdiv(n, LANES)
    if rows <= tile_rows:
        tr = rows                      # single grid step; block == full array extent
        rows_pad = rows
    else:
        tr = tile_rows                 # multiple of 8 -> dense sublane tiling
        rows_pad = pl.cdiv(rows, tr) * tr
    n_pad = rows_pad * LANES

    if n_pad != n:
        # Zero padding is numerically safe: the regularized formula is finite at r = 0.
        x_batch = jnp.pad(x_batch, ((0, 0), (0, n_pad - n)))

    x3 = x_batch.reshape(2 * NUM_DIM, rows_pad, LANES)         # free reshape

    z3 = pl.pallas_call(
        m_ij_kernel,
        out_shape=jax.ShapeDtypeStruct((NUM_DIM * NUM_DIM, rows_pad, LANES), jnp.float32),
        grid=(rows_pad // tr,),
        in_specs=[pl.BlockSpec((2 * NUM_DIM, tr, LANES), lambda i: (0, i, 0))],
        out_specs=pl.BlockSpec((NUM_DIM * NUM_DIM, tr, LANES), lambda i: (0, i, 0)),
        compiler_params=pltpu.CompilerParams(dimension_semantics=("parallel",)),
    )(x3)

    z = z3.reshape(NUM_DIM * NUM_DIM, n_pad)                   # free reshape
    if n_pad != n:
        z = z[:, :n]
    return z


def m_ij_forward(x):
    """Module-faithful forward: x (2*NUM_DIM, 1) -> (NUM_DIM*NUM_DIM, 1)."""
    x = jnp.asarray(x, jnp.float32).reshape(2 * NUM_DIM, 1)
    return m_ij_batched(x)


def m_ij_reference(x):
    """Plain-JAX reference mirroring the PyTorch forward."""
    x = jnp.asarray(x, jnp.float32)
    vec = x[0:NUM_DIM, 0] - x[NUM_DIM:2 * NUM_DIM, 0]
    r_sq = jnp.sum(vec ** 2)
    r = jnp.sqrt(r_sq)
    prefactor = 1.0 / (EIGHT_PI_ETA * (r + EPSILON))
    m = prefactor * (jnp.eye(NUM_DIM, dtype=jnp.float32) +
                     jnp.outer(vec, vec) / (r_sq + EPS1))
    return m.reshape(-1, 1)


def m_ij_reference_batched(x_batch):
    """(6, N) -> (9, N) vectorized plain-JAX reference."""
    xb = jnp.asarray(x_batch, jnp.float32)
    vec = xb[0:NUM_DIM, :] - xb[NUM_DIM:2 * NUM_DIM, :]        # (3, N)
    r_sq = jnp.sum(vec ** 2, axis=0)                           # (N,)
    r = jnp.sqrt(r_sq)
    prefactor = 1.0 / (EIGHT_PI_ETA * (r + EPSILON))           # (N,)
    eye = jnp.eye(NUM_DIM, dtype=jnp.float32).reshape(NUM_DIM * NUM_DIM, 1)
    outer = (vec[:, None, :] * vec[None, :, :]).reshape(NUM_DIM * NUM_DIM, -1)
    return prefactor[None, :] * (eye + outer / (r_sq + EPS1)[None, :])


if __name__ == "__main__":
    RTOL, ATOL = 1e-5, 1e-8   # exact divisions -> tight tolerances

    # Module-faithful single-pair path: (6, 1) -> (9, 1).
    x = jax.random.normal(jax.random.PRNGKey(0), (2 * NUM_DIM, 1), dtype=jnp.float32)
    z = jax.block_until_ready(m_ij_forward(x))
    z_ref = m_ij_reference(x)
    assert z.shape == (NUM_DIM * NUM_DIM, 1)
    assert jnp.allclose(z, z_ref, rtol=RTOL, atol=ATOL), (z, z_ref)

    # x = 0 regularized limit used in the original script.
    x0 = jnp.zeros((2 * NUM_DIM, 1), dtype=jnp.float32)
    z0 = jax.block_until_ready(m_ij_forward(x0))
    assert jnp.allclose(z0, m_ij_reference(x0), rtol=RTOL, atol=ATOL)

    # Small batched path exercising the multi-step grid (rows=16, TR=8, grid=2),
    # with N a multiple of the tile so no wrapper pad/slice is emitted.
    n = 2048
    xb = 3.0 * jax.random.normal(jax.random.PRNGKey(1),
                                 (2 * NUM_DIM, n), dtype=jnp.float32)
    zb = jax.block_until_ready(m_ij_batched(xb, tile_rows=8))
    zb_ref = m_ij_reference_batched(xb)
    assert zb.shape == (NUM_DIM * NUM_DIM, n)
    assert jnp.allclose(zb, zb_ref, rtol=RTOL, atol=ATOL), (zb, zb_ref)

    print("KERNEL_OK")
</pallas_src>

<mosaic_0001>
module attributes {stable_mosaic.version = 11 : i64} {
  func.func @m_ij_kernel(%arg0: i32, %arg1: memref<6x1x128xf32, #tpu.memory_space<vmem>>, %arg2: memref<9x1x128xf32, #tpu.memory_space<vmem>>) attributes {dimension_semantics = [#tpu.dimension_semantics<parallel>], iteration_bounds = array<i64: 1>, scalar_prefetch = 0 : i64, scratch_operands = 0 : i64, tpu.core_type = #tpu.core_type<tc>, window_params = [{transform_indices = @transform_0, window_bounds = array<i64: 6, 1, 128>}, {transform_indices = @transform_1, window_bounds = array<i64: 9, 1, 128>}]} {
    %c0 = arith.constant 0 : index
    %c0_0 = arith.constant 0 : index
    %c0_1 = arith.constant 0 : index
    %0 = vector.load %arg1[%c0, %c0_0, %c0_1] : memref<6x1x128xf32, #tpu.memory_space<vmem>>, vector<1x1x128xf32>
    %1 = vector.shape_cast %0 : vector<1x1x128xf32> to vector<1x128xf32>
    %c3 = arith.constant 3 : index
    %c0_2 = arith.constant 0 : index
    %c0_3 = arith.constant 0 : index
    %2 = vector.load %arg1[%c3, %c0_2, %c0_3] : memref<6x1x128xf32, #tpu.memory_space<vmem>>, vector<1x1x128xf32>
    %3 = vector.shape_cast %2 : vector<1x1x128xf32> to vector<1x128xf32>
    %4 = arith.subf %1, %3 : vector<1x128xf32>
    %c1 = arith.constant 1 : index
    %c0_4 = arith.constant 0 : index
    %c0_5 = arith.constant 0 : index
    %5 = vector.load %arg1[%c1, %c0_4, %c0_5] : memref<6x1x128xf32, #tpu.memory_space<vmem>>, vector<1x1x128xf32>
    %6 = vector.shape_cast %5 : vector<1x1x128xf32> to vector<1x128xf32>
    %c4 = arith.constant 4 : index
    %c0_6 = arith.constant 0 : index
    %c0_7 = arith.constant 0 : index
    %7 = vector.load %arg1[%c4, %c0_6, %c0_7] : memref<6x1x128xf32, #tpu.memory_space<vmem>>, vector<1x1x128xf32>
    %8 = vector.shape_cast %7 : vector<1x1x128xf32> to vector<1x128xf32>
    %9 = arith.subf %6, %8 : vector<1x128xf32>
    %c2 = arith.constant 2 : index
    %c0_8 = arith.constant 0 : index
    %c0_9 = arith.constant 0 : index
    %10 = vector.load %arg1[%c2, %c0_8, %c0_9] : memref<6x1x128xf32, #tpu.memory_space<vmem>>, vector<1x1x128xf32>
    %11 = vector.shape_cast %10 : vector<1x1x128xf32> to vector<1x128xf32>
    %c5 = arith.constant 5 : index
    %c0_10 = arith.constant 0 : index
    %c0_11 = arith.constant 0 : index
    %12 = vector.load %arg1[%c5, %c0_10, %c0_11] : memref<6x1x128xf32, #tpu.memory_space<vmem>>, vector<1x1x128xf32>
    %13 = vector.shape_cast %12 : vector<1x1x128xf32> to vector<1x128xf32>
    %14 = arith.subf %11, %13 : vector<1x128xf32>
    %15 = arith.mulf %4, %4 : vector<1x128xf32>
    %16 = arith.mulf %9, %9 : vector<1x128xf32>
    %17 = arith.addf %15, %16 : vector<1x128xf32>
    %18 = arith.mulf %14, %14 : vector<1x128xf32>
    %19 = arith.addf %17, %18 : vector<1x128xf32>
    %20 = math.sqrt %19 : vector<1x128xf32>
    %cst = arith.constant 3.825000e+00 : f32
    %21 = vector.broadcast %cst : f32 to vector<1x128xf32>
    %22 = arith.addf %20, %21 : vector<1x128xf32>
    %cst_12 = arith.constant 25.1327419 : f32
    %23 = vector.broadcast %cst_12 : f32 to vector<1x128xf32>
    %24 = arith.mulf %23, %22 : vector<1x128xf32>
    %cst_13 = arith.constant 1.000000e+00 : f32
    %25 = vector.broadcast %cst_13 : f32 to vector<1x128xf32>
    %26 = arith.divf %25, %24 : vector<1x128xf32>
    %cst_14 = arith.constant 9.99999996E-13 : f32
    %27 = vector.broadcast %cst_14 : f32 to vector<1x128xf32>
    %28 = arith.addf %19, %27 : vector<1x128xf32>
    %29 = arith.divf %26, %28 : vector<1x128xf32>
    %30 = arith.mulf %4, %9 : vector<1x128xf32>
    %31 = arith.mulf %30, %29 : vector<1x128xf32>
    %32 = arith.mulf %4, %14 : vector<1x128xf32>
    %33 = arith.mulf %32, %29 : vector<1x128xf32>
    %34 = arith.mulf %9, %14 : vector<1x128xf32>
    %35 = arith.mulf %34, %29 : vector<1x128xf32>
    %36 = arith.mulf %4, %4 : vector<1x128xf32>
    %37 = arith.mulf %36, %29 : vector<1x128xf32>
    %38 = arith.addf %37, %26 : vector<1x128xf32>
    %c0_15 = arith.constant 0 : index
    %c0_16 = arith.constant 0 : index
    %c0_17 = arith.constant 0 : index
    %39 = vector.load %arg2[%c0_15, %c0_16, %c0_17] : memref<9x1x128xf32, #tpu.memory_space<vmem>>, vector<1x1x128xf32>
    %40 = vector.shape_cast %39 : vector<1x1x128xf32> to vector<1x128xf32>
    %41 = vector.shape_cast %38 : vector<1x128xf32> to vector<1x1x128xf32>
    tpu.vector_store %arg2[%c0_15, %c0_16, %c0_17], %41 {strides = array<i32>} : memref<9x1x128xf32, #tpu.memory_space<vmem>>, vector<1x1x128xf32>,
    %c1_18 = arith.constant 1 : index
    %c0_19 = arith.constant 0 : index
    %c0_20 = arith.constant 0 : index
    %42 = vector.load %arg2[%c1_18, %c0_19, %c0_20] : memref<9x1x128xf32, #tpu.memory_space<vmem>>, vector<1x1x128xf32>
    %43 = vector.shape_cast %42 : vector<1x1x128xf32> to vector<1x128xf32>
    %44 = vector.shape_cast %31 : vector<1x128xf32> to vector<1x1x128xf32>
    tpu.vector_store %arg2[%c1_18, %c0_19, %c0_20], %44 {strides = array<i32>} : memref<9x1x128xf32, #tpu.memory_space<vmem>>, vector<1x1x128xf32>,
    %c2_21 = arith.constant 2 : index
    %c0_22 = arith.constant 0 : index
    %c0_23 = arith.constant 0 : index
    %45 = vector.load %arg2[%c2_21, %c0_22, %c0_23] : memref<9x1x128xf32, #tpu.memory_space<vmem>>, vector<1x1x128xf32>
    %46 = vector.shape_cast %45 : vector<1x1x128xf32> to vector<1x128xf32>
    %47 = vector.shape_cast %33 : vector<1x128xf32> to vector<1x1x128xf32>
    tpu.vector_store %arg2[%c2_21, %c0_22, %c0_23], %47 {strides = array<i32>} : memref<9x1x128xf32, #tpu.memory_space<vmem>>, vector<1x1x128xf32>,
    %c3_24 = arith.constant 3 : index
    %c0_25 = arith.constant 0 : index
    %c0_26 = arith.constant 0 : index
    %48 = vector.load %arg2[%c3_24, %c0_25, %c0_26] : memref<9x1x128xf32, #tpu.memory_space<vmem>>, vector<1x1x128xf32>
    %49 = vector.shape_cast %48 : vector<1x1x128xf32> to vector<1x128xf32>
    %50 = vector.shape_cast %31 : vector<1x128xf32> to vector<1x1x128xf32>
    tpu.vector_store %arg2[%c3_24, %c0_25, %c0_26], %50 {strides = array<i32>} : memref<9x1x128xf32, #tpu.memory_space<vmem>>, vector<1x1x128xf32>,
    %51 = arith.mulf %9, %9 : vector<1x128xf32>
    %52 = arith.mulf %51, %29 : vector<1x128xf32>
    %53 = arith.addf %52, %26 : vector<1x128xf32>
    %c4_27 = arith.constant 4 : index
    %c0_28 = arith.constant 0 : index
    %c0_29 = arith.constant 0 : index
    %54 = vector.load %arg2[%c4_27, %c0_28, %c0_29] : memref<9x1x128xf32, #tpu.memory_space<vmem>>, vector<1x1x128xf32>
    %55 = vector.shape_cast %54 : vector<1x1x128xf32> to vector<1x128xf32>
    %56 = vector.shape_cast %53 : vector<1x128xf32> to vector<1x1x128xf32>
    tpu.vector_store %arg2[%c4_27, %c0_28, %c0_29], %56 {strides = array<i32>} : memref<9x1x128xf32, #tpu.memory_space<vmem>>, vector<1x1x128xf32>,
    %c5_30 = arith.constant 5 : index
    %c0_31 = arith.constant 0 : index
    %c0_32 = arith.constant 0 : index
    %57 = vector.load %arg2[%c5_30, %c0_31, %c0_32] : memref<9x1x128xf32, #tpu.memory_space<vmem>>, vector<1x1x128xf32>
    %58 = vector.shape_cast %57 : vector<1x1x128xf32> to vector<1x128xf32>
    %59 = vector.shape_cast %35 : vector<1x128xf32> to vector<1x1x128xf32>
    tpu.vector_store %arg2[%c5_30, %c0_31, %c0_32], %59 {strides = array<i32>} : memref<9x1x128xf32, #tpu.memory_space<vmem>>, vector<1x1x128xf32>,
    %c6 = arith.constant 6 : index
    %c0_33 = arith.constant 0 : index
    %c0_34 = arith.constant 0 : index
    %60 = vector.load %arg2[%c6, %c0_33, %c0_34] : memref<9x1x128xf32, #tpu.memory_space<vmem>>, vector<1x1x128xf32>
    %61 = vector.shape_cast %60 : vector<1x1x128xf32> to vector<1x128xf32>
    %62 = vector.shape_cast %33 : vector<1x128xf32> to vector<1x1x128xf32>
    tpu.vector_store %arg2[%c6, %c0_33, %c0_34], %62 {strides = array<i32>} : memref<9x1x128xf32, #tpu.memory_space<vmem>>, vector<1x1x128xf32>,
    %c7 = arith.constant 7 : index
    %c0_35 = arith.constant 0 : index
    %c0_36 = arith.constant 0 : index
    %63 = vector.load %arg2[%c7, %c0_35, %c0_36] : memref<9x1x128xf32, #tpu.memory_space<vmem>>, vector<1x1x128xf32>
    %64 = vector.shape_cast %63 : vector<1x1x128xf32> to vector<1x128xf32>
    %65 = vector.shape_cast %35 : vector<1x128xf32> to vector<1x1x128xf32>
    tpu.vector_store %arg2[%c7, %c0_35, %c0_36], %65 {strides = array<i32>} : memref<9x1x128xf32, #tpu.memory_space<vmem>>, vector<1x1x128xf32>,
    %66 = arith.mulf %14, %14 : vector<1x128xf32>
    %67 = arith.mulf %66, %29 : vector<1x128xf32>
    %68 = arith.addf %67, %26 : vector<1x128xf32>
    %c8 = arith.constant 8 : index
    %c0_37 = arith.constant 0 : index
    %c0_38 = arith.constant 0 : index
    %69 = vector.load %arg2[%c8, %c0_37, %c0_38] : memref<9x1x128xf32, #tpu.memory_space<vmem>>, vector<1x1x128xf32>
    %70 = vector.shape_cast %69 : vector<1x1x128xf32> to vector<1x128xf32>
    %71 = vector.shape_cast %68 : vector<1x128xf32> to vector<1x1x128xf32>
    tpu.vector_store %arg2[%c8, %c0_37, %c0_38], %71 {strides = array<i32>} : memref<9x1x128xf32, #tpu.memory_space<vmem>>, vector<1x1x128xf32>,
    return
  }
  func.func @transform_0(%arg0: i32) -> (i32, i32, i32) {
    %c0_i32 = arith.constant 0 : i32
    %c0_i32_0 = arith.constant 0 : i32
    %c0_i32_1 = arith.constant 0 : i32
    return %c0_i32, %arg0, %c0_i32_0 : i32, i32, i32
  }
  func.func @transform_1(%arg0: i32) -> (i32, i32, i32) {
    %c0_i32 = arith.constant 0 : i32
    %c0_i32_0 = arith.constant 0 : i32
    %c0_i32_1 = arith.constant 0 : i32
    return %c0_i32, %arg0, %c0_i32_0 : i32, i32, i32
  }
}

</mosaic_0001>

<llo_original>
// kernel: tpu_custom_call.1
$region0: #{tpu_custom_call.1}
  #allocation0 [shape = 'u32[]', space=smem, size = 0x4, offset = 0x4, fixed_abs, tag = 'smem constant byte address 0x4 - core index']
  #allocation1 [shape = 'u32[144,128]{1,0:T(1,128)}', space=vmem, size = 0x12000, scoped, tag = 'internal scratch']
  %s0 = inlined_call_operand.hbm [shape: f32[6,1,128], index: 0, kind: input, shape index: {}]
  %s1 = inlined_call_operand.hbm [shape: f32[9,1,128], index: 1, kind: output, shape index: {}]
  %s2 = sld [smem:[#allocation0]]
  $region18: #{tpu_custom_call.1} parent=0
    _
  %s4 = ssub.s32 1, %s2
  %s5 = scalar_select 0, %s4, %s2
  $region1: #{tpu_custom_call.1} parent=0
    #allocation2 [shape = 'u8[3072]{0}', space=vmem, size = 0xc00, scoped, tag = 'input window, operand 0, single buffered']
    #allocation3 [shape = 's32[1]{0}', space=sflag, size = 0x4, scoped, tag = 'scoped memory for tpu_custom_call.1']
    #allocation4 [shape = 's32[1]{0}', space=sflag, size = 0x4, scoped, tag = 'scoped memory for tpu_custom_call.1']
    #allocation5 [shape = 'u8[4608]{0}', space=vmem, size = 0x1400, scoped, tag = 'output window, operand 0, single buffered']
    %6 = vsyncpa [#allocation3], 0
    %7 = vsyncpa [#allocation4], 0
    // Predicated region
    $region2: #{tpu_custom_call.1} parent=1 // pred_check
      _
    $region3: #{tpu_custom_call.1} parent=1 // pred_check_branch
      %9 = sbr.rel (0) target = $region5
    $region4: #{tpu_custom_call.1} parent=1 // pred_region
      %s11 = ssub.s32 96, 96
      %12 = vsyncadd [#allocation3], %s11
      %s13 = sshll.u32 [#allocation2], 4
      %s14 = int_to_ptr.vmem [resolvable:$true] %s13
      %19 = dma.hbm_to_vmem [thread:$0]  %s0, 96, %s14, [#allocation3], 16, 16, 1
    $region5: #{tpu_custom_call.1} parent=1 // pred_fallthru
      _
    // Predicated region
    $region6: #{tpu_custom_call.1} parent=1 // pred_check
      _
    $region7: #{tpu_custom_call.1} parent=1 // pred_check_branch
      %21 = sbr.rel (0) target = $region9
    $region8: #{tpu_custom_call.1} parent=1 // pred_region
      %22 = dma.done [#allocation3], 96
    $region9: #{tpu_custom_call.1} parent=1 // pred_fallthru
      _
    %v23 = vld [vmem:[#allocation2] sm:$0x1]
    %s24 = scalar_lea.vmem [#allocation2], 3
    %v25 = vld [vmem:[%s24] sm:$0x1]
    %v26 = vsub.f32 %v23, %v25
    %s27 = scalar_lea.vmem [#allocation2], 1
    %v28 = vld [vmem:[%s27] sm:$0x1]
    %s29 = scalar_lea.vmem [#allocation2], 4
    %v30 = vld [vmem:[%s29] sm:$0x1]
    %v31 = vsub.f32 %v28, %v30
    %s32 = scalar_lea.vmem [#allocation2], 2
    %v33 = vld [vmem:[%s32] sm:$0x1]
    %s34 = scalar_lea.vmem [#allocation2], 5
    %v35 = vld [vmem:[%s34] sm:$0x1]
    %v36 = vsub.f32 %v33, %v35
    %v37 = vmul.f32 %v26, %v26
    %v38 = vmul.f32 %v31, %v31
    %v39 = vadd.f32 %v37, %v38
    %v40 = vmul.f32 %v36, %v36
    %v41 = vadd.f32 %v39, %v40
    %v42 = vrsqrt.pop %v41
    %v43 = vmul.f32 %v41, %v42
    %vm44 = vcmp.eq.f32.partialorder %v41, inf
    %v45 = vsel %vm44, %v41, %v43
    %vm46 = vcmp.eq.f32.partialorder %v41, 0.0
    %v47 = vand.u32 %v41, 2147483648
    %v48 = vsel %vm46, %v47, %v45
    %v49 = vadd.f32 %v48, 3.825
    %v50 = vmul.f32 %v49, 25.132742
    %v51 = vrcp.pop %v50
    %v52 = vmul.f32 1.0, %v51
    %v53 = vadd.f32 %v41, 1e-12
    %v54 = vrcp.pop %v53
    %v55 = vmul.f32 %v52, %v54
    %v56 = vmul.f32 %v26, %v31
    %v57 = vmul.f32 %v56, %v55
    %v58 = vmul.f32 %v26, %v36
    %v59 = vmul.f32 %v58, %v55
    %v60 = vmul.f32 %v31, %v36
    %v61 = vmul.f32 %v60, %v55
    %v62 = vmul.f32 %v37, %v55
    %v63 = vadd.f32 %v62, %v52
    %64 = vst [vmem:[#allocation5] sm:$0x1] %v63
    %s65 = scalar_lea.vmem [#allocation5], 1
    %66 = vst [vmem:[%s65] sm:$0x1] %v57
    %s67 = scalar_lea.vmem [#allocation5], 2
    %68 = vst [vmem:[%s67] sm:$0x1] %v59
    %s69 = scalar_lea.vmem [#allocation5], 3
    %70 = vst [vmem:[%s69] sm:$0x1] %v57
    %v71 = vmul.f32 %v38, %v55
    %v72 = vadd.f32 %v71, %v52
    %s73 = scalar_lea.vmem [#allocation5], 4
    %74 = vst [vmem:[%s73] sm:$0x1] %v72
    %s75 = scalar_lea.vmem [#allocation5], 5
    %76 = vst [vmem:[%s75] sm:$0x1] %v61
    %s77 = scalar_lea.vmem [#allocation5], 6
    %78 = vst [vmem:[%s77] sm:$0x1] %v59
    %s79 = scalar_lea.vmem [#allocation5], 7
    %80 = vst [vmem:[%s79] sm:$0x1] %v61
    %v81 = vmul.f32 %v40, %v55
    %v82 = vadd.f32 %v81, %v52
    %s83 = scalar_lea.vmem [#allocation5], 8
    %84 = vst [vmem:[%s83] sm:$0x1] %v82
    // Predicated region
    $region10: #{tpu_custom_call.1} parent=1 // pred_check
      _
    $region11: #{tpu_custom_call.1} parent=1 // pred_check_branch
      %86 = sbr.rel (0) target = $region13
    $region12: #{tpu_custom_call.1} parent=1 // pred_region
      %s88 = ssub.s32 144, 144
      %89 = vsyncadd [#allocation4], %s88
      %s90 = sshll.u32 [#allocation5], 4
      %s91 = int_to_ptr.vmem [resolvable:$true] %s90
      %96 = dma.vmem_to_hbm [thread:$0]  %s91, 144, %s1, [#allocation4], 16, 16, 1
    $region13: #{tpu_custom_call.1} parent=1 // pred_fallthru
      _
    // Predicated region
    $region14: #{tpu_custom_call.1} parent=1 // pred_check
      _
    $region15: #{tpu_custom_call.1} parent=1 // pred_check_branch
      %98 = sbr.rel (0) target = $region17
    $region16: #{tpu_custom_call.1} parent=1 // pred_region
      %99 = dma.done [#allocation4], 144
    $region17: #{tpu_custom_call.1} parent=1 // pred_fallthru
      _
    %100 = vsyncpa [#allocation3], 1
    %101 = vsyncpa [#allocation4], 1

</llo_original>
